<compile_context>
chip_gen: v7x
topology: tpu7x:2x2x1
jax: 0.10.0
libtpu: 0.0.40
codegen_flags: <defaults>
</compile_context>

<pallas_src>
import math

import jax
import jax.numpy as jnp
import numpy as np
from jax.experimental import pallas as pl
from jax.experimental.pallas import tpu as pltpu


# ----------------------------------------------------------------------------
# Stage 1: input projection, hoisted out of the recurrence.
# ----------------------------------------------------------------------------
def _input_proj_kernel(x_ref, wf_ref, bf_ref, wb_ref, bb_ref, gf_ref, gb_ref):
    x = x_ref[...]
    gf_ref[...] = (jnp.dot(x, wf_ref[...], preferred_element_type=jnp.float32)
                   + bf_ref[...]).astype(gf_ref.dtype)
    gb_ref[...] = (jnp.dot(x, wb_ref[...], preferred_element_type=jnp.float32)
                   + bb_ref[...]).astype(gb_ref.dtype)


# ----------------------------------------------------------------------------
# Stage 2: time-blocked bidirectional recurrence (only h @ W_hh per step).
# ----------------------------------------------------------------------------
def _bilstm_recurrent_kernel(ginf_ref, ginb_ref, whh_f_ref, whh_b_ref,
                             outf_ref, outb_ref,
                             hf, cf, hb, cb):
    tb = pl.program_id(0)

    @pl.when(tb == 0)
    def _():
        hf[...] = jnp.zeros_like(hf)
        cf[...] = jnp.zeros_like(cf)
        hb[...] = jnp.zeros_like(hb)
        cb[...] = jnp.zeros_like(cb)

    t_blk = ginf_ref.shape[0]
    H = hf.shape[-1]

    # NOTE: for production sizes pick H as a multiple of 128 so these gate slices are
    # lane-aligned (avoids masked lane sub-selects inside the serial loop).
    def gate_math(pre, c):
        # PyTorch gate order: i, f, g, o (chunks of size H along the 4H axis).
        i = jax.nn.sigmoid(pre[:, 0:H])
        f = jax.nn.sigmoid(pre[:, H:2 * H])
        g = jnp.tanh(pre[:, 2 * H:3 * H])
        o = jax.nn.sigmoid(pre[:, 3 * H:4 * H])
        c_new = f * c + i * g
        h_new = o * jnp.tanh(c_new)
        return h_new, c_new

    def body(k, carry):
        hf_, cf_, hb_, cb_ = carry

        # Forward direction: local time index k within this block.
        pre_f = ginf_ref[k] + jnp.dot(hf_, whh_f_ref[...],
                                      preferred_element_type=jnp.float32)
        hf_n, cf_n = gate_math(pre_f, cf_)
        outf_ref[k] = hf_n.astype(outf_ref.dtype)

        # Backward direction: local time index reversed within the (already reversed) block.
        kb = t_blk - 1 - k
        pre_b = ginb_ref[kb] + jnp.dot(hb_, whh_b_ref[...],
                                       preferred_element_type=jnp.float32)
        hb_n, cb_n = gate_math(pre_b, cb_)
        outb_ref[kb] = hb_n.astype(outb_ref.dtype)

        return hf_n, cf_n, hb_n, cb_n

    hf_fin, cf_fin, hb_fin, cb_fin = jax.lax.fori_loop(
        0, t_blk, body, (hf[...], cf[...], hb[...], cb[...]), unroll=True)

    hf[...] = hf_fin
    cf[...] = cf_fin
    hb[...] = hb_fin
    cb[...] = cb_fin


# ----------------------------------------------------------------------------
# Stage 3: embedding Linear fused with the directional concat.
# ----------------------------------------------------------------------------
def _embed_kernel(f_ref, b_ref, wf_ref, wb_ref, bias_ref, o_ref):
    o = (jnp.dot(f_ref[...], wf_ref[...], preferred_element_type=jnp.float32)
         + jnp.dot(b_ref[...], wb_ref[...], preferred_element_type=jnp.float32)
         + bias_ref[...])
    o_ref[...] = o.astype(o_ref.dtype)


def _largest_divisor(n, cap):
    for d in range(min(n, cap), 0, -1):
        if n % d == 0:
            return d
    return 1


def bidirectional_lstm(x, params, *, max_time_block=16, max_row_tile=512):
    T, B, nIn = x.shape
    H = params["whh_f"].shape[0]
    G = 4 * H
    nOut = params["w_emb_f"].shape[1]

    TB = T * B
    row_tile = TB if TB <= max_row_tile else max_row_tile
    n_row_blocks = pl.cdiv(TB, row_tile)

    # -------- Stage 1: gin_dir = x @ Wih_dir + bias, both directions, big parallel matmul.
    x2d = x.reshape(TB, nIn)  # contiguous reshape: metadata only, no HBM roundtrip.
    gf2d, gb2d = pl.pallas_call(
        _input_proj_kernel,
        out_shape=(jax.ShapeDtypeStruct((TB, G), jnp.float32),
                   jax.ShapeDtypeStruct((TB, G), jnp.float32)),
        grid_spec=pltpu.PrefetchScalarGridSpec(
            num_scalar_prefetch=0,
            grid=(n_row_blocks,),
            in_specs=[
                pl.BlockSpec((row_tile, nIn), lambda r: (r, 0)),
                pl.BlockSpec((nIn, G), lambda r: (0, 0)),
                pl.BlockSpec((1, G), lambda r: (0, 0)),
                pl.BlockSpec((nIn, G), lambda r: (0, 0)),
                pl.BlockSpec((1, G), lambda r: (0, 0)),
            ],
            out_specs=[
                pl.BlockSpec((row_tile, G), lambda r: (r, 0)),
                pl.BlockSpec((row_tile, G), lambda r: (r, 0)),
            ],
        ),
        compiler_params=pltpu.CompilerParams(
            dimension_semantics=("parallel",)),
    )(x2d, params["wih_f"], params["b_f"], params["wih_b"], params["b_b"])

    gin_f = gf2d.reshape(T, B, G)
    gin_b = gb2d.reshape(T, B, G)

    # -------- Stage 2: serial recurrence, blocked over time.
    t_blk = _largest_divisor(T, max_time_block)
    nblk = T // t_blk

    out_f, out_b = pl.pallas_call(
        _bilstm_recurrent_kernel,
        out_shape=(jax.ShapeDtypeStruct((T, B, H), jnp.float32),
                   jax.ShapeDtypeStruct((T, B, H), jnp.float32)),
        grid_spec=pltpu.PrefetchScalarGridSpec(
            num_scalar_prefetch=0,
            grid=(nblk,),
            in_specs=[
                # forward pre-activations: block t
                pl.BlockSpec((t_blk, B, G), lambda t: (t, 0, 0)),
                # backward pre-activations: reversed block order (time reversal via index_map)
                pl.BlockSpec((t_blk, B, G), lambda t: (nblk - 1 - t, 0, 0)),
                # resident recurrent weights (constant index_map => no re-DMA per step)
                pl.BlockSpec((H, G), lambda t: (0, 0)),
                pl.BlockSpec((H, G), lambda t: (0, 0)),
            ],
            out_specs=[
                pl.BlockSpec((t_blk, B, H), lambda t: (t, 0, 0)),
                pl.BlockSpec((t_blk, B, H), lambda t: (nblk - 1 - t, 0, 0)),
            ],
            scratch_shapes=[pltpu.VMEM((B, H), jnp.float32)] * 4,
        ),
        compiler_params=pltpu.CompilerParams(
            dimension_semantics=("arbitrary",)),
    )(gin_f, gin_b, params["whh_f"], params["whh_b"])

    # -------- Stage 3: fused concat + Linear embedding (no (T,B,2H) concat in HBM).
    f2d = out_f.reshape(TB, H)
    b2d = out_b.reshape(TB, H)
    out2d = pl.pallas_call(
        _embed_kernel,
        out_shape=jax.ShapeDtypeStruct((TB, nOut), jnp.float32),
        grid_spec=pltpu.PrefetchScalarGridSpec(
            num_scalar_prefetch=0,
            grid=(n_row_blocks,),
            in_specs=[
                pl.BlockSpec((row_tile, H), lambda r: (r, 0)),
                pl.BlockSpec((row_tile, H), lambda r: (r, 0)),
                pl.BlockSpec((H, nOut), lambda r: (0, 0)),
                pl.BlockSpec((H, nOut), lambda r: (0, 0)),
                pl.BlockSpec((1, nOut), lambda r: (0, 0)),
            ],
            out_specs=pl.BlockSpec((row_tile, nOut), lambda r: (r, 0)),
        ),
        compiler_params=pltpu.CompilerParams(
            dimension_semantics=("parallel",)),
    )(f2d, b2d, params["w_emb_f"], params["w_emb_b"], params["b_emb"])

    return out2d.reshape(T, B, nOut)


def init_params(key, nIn, H, nOut):
    """Deterministic init mirroring PyTorch's uniform(-1/sqrt(H), 1/sqrt(H))."""
    k = 1.0 / math.sqrt(H)
    ks = jax.random.split(key, 10)
    u = lambda kk, shape, s: jax.random.uniform(kk, shape, jnp.float32, -s, s)
    W_ih_f = u(ks[0], (4 * H, nIn), k)
    W_hh_f = u(ks[1], (4 * H, H), k)
    b_ih_f = u(ks[2], (4 * H,), k)
    b_hh_f = u(ks[3], (4 * H,), k)
    W_ih_b = u(ks[4], (4 * H, nIn), k)
    W_hh_b = u(ks[5], (4 * H, H), k)
    b_ih_b = u(ks[6], (4 * H,), k)
    b_hh_b = u(ks[7], (4 * H,), k)
    k2 = 1.0 / math.sqrt(2 * H)
    W_emb = u(ks[8], (nOut, 2 * H), k2)
    b_emb = u(ks[9], (nOut,), k2)

    # Kernel-friendly (transposed, fused-bias, split-embedding) parameters.
    params = dict(
        wih_f=W_ih_f.T, whh_f=W_hh_f.T, b_f=(b_ih_f + b_hh_f)[None, :],
        wih_b=W_ih_b.T, whh_b=W_hh_b.T, b_b=(b_ih_b + b_hh_b)[None, :],
        w_emb_f=W_emb[:, :H].T,     # (H, nOut): multiplies the forward hidden state
        w_emb_b=W_emb[:, H:].T,     # (H, nOut): multiplies the backward hidden state
        b_emb=b_emb[None, :],
    )
    torch_like = dict(W_ih_f=W_ih_f, W_hh_f=W_hh_f, b_ih_f=b_ih_f, b_hh_f=b_hh_f,
                      W_ih_b=W_ih_b, W_hh_b=W_hh_b, b_ih_b=b_ih_b, b_hh_b=b_hh_b,
                      W_emb=W_emb, b_emb=b_emb)
    return params, torch_like


def ref_forward(x, tp, H):
    """Pure-JAX reference reproducing PyTorch BidirectionalLSTM.forward."""
    def run(xs, W_ih, W_hh, b_ih, b_hh):
        B = xs.shape[1]

        def step(carry, xt):
            h, c = carry
            gates = xt @ W_ih.T + b_ih + h @ W_hh.T + b_hh
            i, f, g, o = jnp.split(gates, 4, axis=-1)
            i = jax.nn.sigmoid(i)
            f = jax.nn.sigmoid(f)
            g = jnp.tanh(g)
            o = jax.nn.sigmoid(o)
            c = f * c + i * g
            h = o * jnp.tanh(c)
            return (h, c), h

        h0 = jnp.zeros((B, H), jnp.float32)
        c0 = jnp.zeros((B, H), jnp.float32)
        _, hs = jax.lax.scan(step, (h0, c0), xs)
        return hs

    fwd = run(x, tp["W_ih_f"], tp["W_hh_f"], tp["b_ih_f"], tp["b_hh_f"])
    bwd = run(x[::-1], tp["W_ih_b"], tp["W_hh_b"], tp["b_ih_b"], tp["b_hh_b"])[::-1]
    rec = jnp.concatenate([fwd, bwd], axis=-1)
    T, B, _ = rec.shape
    out = rec.reshape(T * B, -1) @ tp["W_emb"].T + tp["b_emb"]
    return out.reshape(T, B, -1)


if __name__ == "__main__":
    T, B, nIn, H, nOut = 8, 2, 16, 32, 16
    key = jax.random.PRNGKey(0)
    kx, kp = jax.random.split(key)

    x = jax.random.normal(kx, (T, B, nIn), jnp.float32)   # (seq, batch, nIn)
    params, torch_like = init_params(kp, nIn, H, nOut)

    out = bidirectional_lstm(x, params)
    out = jax.block_until_ready(out)

    ref = ref_forward(x, torch_like, H)
    assert out.shape == (T, B, nOut), out.shape
    np.testing.assert_allclose(np.asarray(out), np.asarray(ref), rtol=3e-5, atol=3e-5)
    print("KERNEL_OK")
</pallas_src>

<mosaic_0001>
module attributes {stable_mosaic.version = 11 : i64} {
  func.func @_input_proj_kernel(%arg0: i32, %arg1: memref<16x16xf32, #tpu.memory_space<vmem>>, %arg2: memref<16x128xf32, #tpu.memory_space<vmem>>, %arg3: memref<1x128xf32, #tpu.memory_space<vmem>>, %arg4: memref<16x128xf32, #tpu.memory_space<vmem>>, %arg5: memref<1x128xf32, #tpu.memory_space<vmem>>, %arg6: memref<16x128xf32, #tpu.memory_space<vmem>>, %arg7: memref<16x128xf32, #tpu.memory_space<vmem>>) attributes {dimension_semantics = [#tpu.dimension_semantics<parallel>], iteration_bounds = array<i64: 1>, scalar_prefetch = 0 : i64, scratch_operands = 0 : i64, tpu.core_type = #tpu.core_type<tc>, window_params = [{transform_indices = @transform_0, window_bounds = array<i64: 16, 16>}, {pipeline_mode = #tpu.pipeline_mode<synchronous>, transform_indices = @transform_1, window_bounds = array<i64: 16, 128>}, {pipeline_mode = #tpu.pipeline_mode<synchronous>, transform_indices = @transform_2, window_bounds = array<i64: 1, 128>}, {pipeline_mode = #tpu.pipeline_mode<synchronous>, transform_indices = @transform_3, window_bounds = array<i64: 16, 128>}, {pipeline_mode = #tpu.pipeline_mode<synchronous>, transform_indices = @transform_4, window_bounds = array<i64: 1, 128>}, {transform_indices = @transform_5, window_bounds = array<i64: 16, 128>}, {transform_indices = @transform_6, window_bounds = array<i64: 16, 128>}]} {
    %c0 = arith.constant 0 : index
    %c0_0 = arith.constant 0 : index
    %0 = vector.load %arg1[%c0, %c0_0] : memref<16x16xf32, #tpu.memory_space<vmem>>, vector<16x16xf32>
    %c0_1 = arith.constant 0 : index
    %c0_2 = arith.constant 0 : index
    %1 = vector.load %arg2[%c0_1, %c0_2] : memref<16x128xf32, #tpu.memory_space<vmem>>, vector<16x128xf32>
    %cst = arith.constant dense<0.000000e+00> : vector<16x128xf32>
    %2 = tpu.matmul %0, %1, %cst {dimension_numbers = #tpu.dot_dimension_numbers<[1], [0], [0], [1], [0, 0, 1, 1], [], []>} : vector<16x16xf32>, vector<16x128xf32>, vector<16x128xf32> -> vector<16x128xf32>
    %c0_3 = arith.constant 0 : index
    %c0_4 = arith.constant 0 : index
    %3 = vector.load %arg3[%c0_3, %c0_4] : memref<1x128xf32, #tpu.memory_space<vmem>>, vector<1x128xf32>
    %4 = vector.broadcast %3 : vector<1x128xf32> to vector<16x128xf32>
    %5 = arith.addf %2, %4 : vector<16x128xf32>
    %c0_5 = arith.constant 0 : index
    %c0_6 = arith.constant 0 : index
    %6 = vector.load %arg6[%c0_5, %c0_6] : memref<16x128xf32, #tpu.memory_space<vmem>>, vector<16x128xf32>
    tpu.vector_store %arg6[%c0_5, %c0_6], %5 {strides = array<i32>} : memref<16x128xf32, #tpu.memory_space<vmem>>, vector<16x128xf32>,
    %c0_7 = arith.constant 0 : index
    %c0_8 = arith.constant 0 : index
    %7 = vector.load %arg4[%c0_7, %c0_8] : memref<16x128xf32, #tpu.memory_space<vmem>>, vector<16x128xf32>
    %cst_9 = arith.constant dense<0.000000e+00> : vector<16x128xf32>
    %8 = tpu.matmul %0, %7, %cst_9 {dimension_numbers = #tpu.dot_dimension_numbers<[1], [0], [0], [1], [0, 0, 1, 1], [], []>} : vector<16x16xf32>, vector<16x128xf32>, vector<16x128xf32> -> vector<16x128xf32>
    %c0_10 = arith.constant 0 : index
    %c0_11 = arith.constant 0 : index
    %9 = vector.load %arg5[%c0_10, %c0_11] : memref<1x128xf32, #tpu.memory_space<vmem>>, vector<1x128xf32>
    %10 = vector.broadcast %9 : vector<1x128xf32> to vector<16x128xf32>
    %11 = arith.addf %8, %10 : vector<16x128xf32>
    %c0_12 = arith.constant 0 : index
    %c0_13 = arith.constant 0 : index
    %12 = vector.load %arg7[%c0_12, %c0_13] : memref<16x128xf32, #tpu.memory_space<vmem>>, vector<16x128xf32>
    tpu.vector_store %arg7[%c0_12, %c0_13], %11 {strides = array<i32>} : memref<16x128xf32, #tpu.memory_space<vmem>>, vector<16x128xf32>,
    return
  }
  func.func @transform_0(%arg0: i32) -> (i32, i32) {
    %c0_i32 = arith.constant 0 : i32
    %c0_i32_0 = arith.constant 0 : i32
    return %arg0, %c0_i32 : i32, i32
  }
  func.func @transform_1(%arg0: i32) -> (i32, i32) {
    %c0_i32 = arith.constant 0 : i32
    %c0_i32_0 = arith.constant 0 : i32
    %c0_i32_1 = arith.constant 0 : i32
    return %c0_i32, %c0_i32_0 : i32, i32
  }
  func.func @transform_2(%arg0: i32) -> (i32, i32) {
    %c0_i32 = arith.constant 0 : i32
    %c0_i32_0 = arith.constant 0 : i32
    %c0_i32_1 = arith.constant 0 : i32
    return %c0_i32, %c0_i32_0 : i32, i32
  }
  func.func @transform_3(%arg0: i32) -> (i32, i32) {
    %c0_i32 = arith.constant 0 : i32
    %c0_i32_0 = arith.constant 0 : i32
    %c0_i32_1 = arith.constant 0 : i32
    return %c0_i32, %c0_i32_0 : i32, i32
  }
  func.func @transform_4(%arg0: i32) -> (i32, i32) {
    %c0_i32 = arith.constant 0 : i32
    %c0_i32_0 = arith.constant 0 : i32
    %c0_i32_1 = arith.constant 0 : i32
    return %c0_i32, %c0_i32_0 : i32, i32
  }
  func.func @transform_5(%arg0: i32) -> (i32, i32) {
    %c0_i32 = arith.constant 0 : i32
    %c0_i32_0 = arith.constant 0 : i32
    return %arg0, %c0_i32 : i32, i32
  }
  func.func @transform_6(%arg0: i32) -> (i32, i32) {
    %c0_i32 = arith.constant 0 : i32
    %c0_i32_0 = arith.constant 0 : i32
    return %arg0, %c0_i32 : i32, i32
  }
}

</mosaic_0001>

<llo_original>
// kernel: tpu_custom_call.1
$region0: #{tpu_custom_call.1}
  #allocation0 [shape = 'u32[]', space=smem, size = 0x4, offset = 0x4, fixed_abs, tag = 'smem constant byte address 0x4 - core index']
  #allocation1 [shape = 'u32[144,128]{1,0:T(1,128)}', space=vmem, size = 0x12000, scoped, tag = 'internal scratch']
  %s0 = inlined_call_operand.hbm [shape: f32[16,16], index: 0, kind: input, shape index: {}]
  %s1 = inlined_call_operand.hbm [shape: f32[16,128], index: 1, kind: input, shape index: {}]
  %s2 = inlined_call_operand.vmem [shape: f32[1,128], index: 2, kind: input, shape index: {}]
  %s3 = inlined_call_operand.hbm [shape: f32[16,128], index: 3, kind: input, shape index: {}]
  %s4 = inlined_call_operand.vmem [shape: f32[1,128], index: 4, kind: input, shape index: {}]
  %s5 = inlined_call_operand.hbm [shape: f32[16,128], index: 5, kind: output, shape index: {0}]
  %s6 = inlined_call_operand.hbm [shape: f32[16,128], index: 6, kind: output, shape index: {1}]
  %7 = xla_tuple %s5, %s6
  %s8 = sld [smem:[#allocation0]]
  $region50: #{tpu_custom_call.1} parent=0
    _
  %s10 = ssub.s32 1, %s8
  %s11 = scalar_select 0, %s10, %s8
  $region1: #{tpu_custom_call.1} parent=0
    #allocation2 [shape = 'u8[8192]{0}', space=vmem, size = 0x2000, scoped, tag = 'input window, operand 0, single buffered']
    #allocation3 [shape = 's32[1]{0}', space=sflag, size = 0x4, scoped, tag = 'scoped memory for tpu_custom_call.1']
    #allocation4 [shape = 's32[1]{0}', space=sflag, size = 0x4, scoped, tag = 'scoped memory for tpu_custom_call.1']
    #allocation5 [shape = 'u8[8192]{0}', space=vmem, size = 0x2000, scoped, tag = 'input window, operand 1, single buffered']
    #allocation6 [shape = 's32[1]{0}', space=sflag, size = 0x4, scoped, tag = 'scoped memory for tpu_custom_call.1']
    #allocation7 [shape = 'u8[8192]{0}', space=vmem, size = 0x2000, scoped, tag = 'input window, operand 3, single buffered']
    #allocation8 [shape = 'u8[8192]{0}', space=vmem, size = 0x2000, scoped, tag = 'output window, operand 0, single buffered']
    #allocation9 [shape = 'u8[8192]{0}', space=vmem, size = 0x2000, scoped, tag = 'output window, operand 1, single buffered']
    #allocation10 [shape = 's32[1]{0}', space=sflag, size = 0x4, scoped, tag = 'scoped memory for tpu_custom_call.1']
    %12 = vsyncpa [#allocation3], 0
    %13 = vsyncpa [#allocation6], 0
    %14 = vsyncpa [#allocation4], 0
    %15 = vsyncpa [#allocation10], 0
    // Predicated region
    $region2: #{tpu_custom_call.1} parent=1 // pred_check
      _
    $region3: #{tpu_custom_call.1} parent=1 // pred_check_branch
      %17 = sbr.rel (0) target = $region5
    $region4: #{tpu_custom_call.1} parent=1 // pred_region
      %s19 = ssub.s32 256, 256
      %20 = vsyncadd [#allocation3], %s19
      %s21 = sshll.u32 [#allocation2], 4
      %s22 = int_to_ptr.vmem [resolvable:$true] %s21
      %27 = dma.hbm_to_vmem [thread:$0]  %s0, 256, %s22, [#allocation3], 128, 128, 8
    $region5: #{tpu_custom_call.1} parent=1 // pred_fallthru
      _
    // Predicated region
    $region6: #{tpu_custom_call.1} parent=1 // pred_check
      _
    $region7: #{tpu_custom_call.1} parent=1 // pred_check_branch
      %29 = sbr.rel (0) target = $region9
    $region8: #{tpu_custom_call.1} parent=1 // pred_region
      %s31 = ssub.s32 256, 256
      %32 = vsyncadd [#allocation6], %s31
      %s33 = sshll.u32 [#allocation5], 4
      %s34 = int_to_ptr.vmem [resolvable:$true] %s33
      %39 = dma.hbm_to_vmem [thread:$0]  %s1, 256, %s34, [#allocation6], 128, 128, 8
    $region9: #{tpu_custom_call.1} parent=1 // pred_fallthru
      _
    // Predicated region
    $region10: #{tpu_custom_call.1} parent=1 // pred_check
      _
    $region11: #{tpu_custom_call.1} parent=1 // pred_check_branch
      %41 = sbr.rel (0) target = $region13
    $region12: #{tpu_custom_call.1} parent=1 // pred_region
      _
    $region13: #{tpu_custom_call.1} parent=1 // pred_fallthru
      _
    // Predicated region
    $region14: #{tpu_custom_call.1} parent=1 // pred_check
      _
    $region15: #{tpu_custom_call.1} parent=1 // pred_check_branch
      %43 = sbr.rel (0) target = $region17
    $region16: #{tpu_custom_call.1} parent=1 // pred_region
      %s45 = ssub.s32 256, 256
      %46 = vsyncadd [#allocation6], %s45
      %s47 = sshll.u32 [#allocation7], 4
      %s48 = int_to_ptr.vmem [resolvable:$true] %s47
      %53 = dma.hbm_to_vmem [thread:$0]  %s3, 256, %s48, [#allocation6], 128, 128, 8
    $region17: #{tpu_custom_call.1} parent=1 // pred_fallthru
      _
    // Predicated region
    $region18: #{tpu_custom_call.1} parent=1 // pred_check
      _
    $region19: #{tpu_custom_call.1} parent=1 // pred_check_branch
      %55 = sbr.rel (0) target = $region21
    $region20: #{tpu_custom_call.1} parent=1 // pred_region
      _
    $region21: #{tpu_custom_call.1} parent=1 // pred_fallthru
      _
    // Predicated region
    $region22: #{tpu_custom_call.1} parent=1 // pred_check
      _
    $region23: #{tpu_custom_call.1} parent=1 // pred_check_branch
      %57 = sbr.rel (0) target = $region25
    $region24: #{tpu_custom_call.1} parent=1 // pred_region
      %58 = dma.done [#allocation3], 256
    $region25: #{tpu_custom_call.1} parent=1 // pred_fallthru
      _
    // Predicated region
    $region26: #{tpu_custom_call.1} parent=1 // pred_check
      _
    $region27: #{tpu_custom_call.1} parent=1 // pred_check_branch
      %60 = sbr.rel (0) target = $region29
    $region28: #{tpu_custom_call.1} parent=1 // pred_region
      %61 = dma.done [#allocation6], 256
    $region29: #{tpu_custom_call.1} parent=1 // pred_fallthru
      _
    // Predicated region
    $region30: #{tpu_custom_call.1} parent=1 // pred_check
      _
    $region31: #{tpu_custom_call.1} parent=1 // pred_check_branch
      %63 = sbr.rel (0) target = $region33
    $region32: #{tpu_custom_call.1} parent=1 // pred_region
      %64 = dma.done [#allocation6], 256
    $region33: #{tpu_custom_call.1} parent=1 // pred_fallthru
      _
    %v65 = vld [vmem:[#allocation2] sm:$0xff]
    %v66 = vld [vmem:[#allocation2 + $0x8] sm:$0xff]
    %v67 = vld [vmem:[#allocation5] sm:$0xff]
    %v68 = vld [vmem:[#allocation5 + $0x8] sm:$0xff]
    %v69 = vld [vmem:[%s2] sm:$0x1]
    %v71 = vlaneseq
    %v72 = vshrl.u32 %v71, 7
    %v73 = vsub.s32 0, %v72
    %v74 = vrot.slane %v69, %v73
    %vm76 = vcmask 130048
    %v78 = vsel %vm76, %v65, 0
    %v81 = vsel %vm76, %v66, 0
    %83 = vmatprep.subr.mxu0 0.0
    %84 = vmatpush1.msra.mxu0 %v67
    %85 = vmatprep.subr.mxu0 0.0
    %86 = vmatpush1.msra.mxu0 %v68
    %87 = vmatprep.subr.mxu0 0.0
    %88 = vmatpush1.msra.mxu0 0.0
    %89 = vmatprep.subr.mxu0 0.0
    %90 = vmatpush1.msra.mxu0 0.0
    %91 = vmatprep.subr.mxu0 0.0
    %92 = vmatpush1.msra.mxu0 0.0
    %93 = vmatprep.subr.mxu0 0.0
    %94 = vmatpush1.msra.mxu0 0.0
    %95 = vmatprep.subr.mxu0 0.0
    %96 = vmatpush1.msra.mxu0 0.0
    %97 = vmatprep.subr.mxu0 0.0
    %98 = vmatpush1.msra.mxu0 0.0
    %99 = vmatprep.subr.mxu0 0.0
    %100 = vmatpush1.msra.mxu0 0.0
    %101 = vmatprep.subr.mxu0 0.0
    %102 = vmatpush1.msra.mxu0 0.0
    %103 = vmatprep.subr.mxu0 0.0
    %104 = vmatpush1.msra.mxu0 0.0
    %105 = vmatprep.subr.mxu0 0.0
    %106 = vmatpush1.msra.mxu0 0.0
    %107 = vmatprep.subr.mxu0 0.0
    %108 = vmatpush1.msra.mxu0 0.0
    %109 = vmatprep.subr.mxu0 0.0
    %110 = vmatpush1.msra.mxu0 0.0
    %111 = vmatprep.subr.mxu0 0.0
    %112 = vmatpush1.msra.mxu0 0.0
    %113 = vmatprep.subr.mxu0 0.0
    %114 = vmatpush1.msra.mxu0 0.0
    %115 = vmatprep.subr.mxu0 0.0
    %116 = vmatpush1.msra.mxu0 0.0
    %117 = vmatprep.subr.mxu0 0.0
    %118 = vmatpush1.msra.mxu0 0.0
    %119 = vmatprep.subr.mxu0 0.0
    %120 = vmatpush1.msra.mxu0 0.0
    %121 = vmatprep.subr.mxu0 0.0
    %122 = vmatpush1.msra.mxu0 0.0
    %123 = vmatprep.subr.mxu0 0.0
    %124 = vmatpush1.msra.mxu0 0.0
    %125 = vmatprep.subr.mxu0 0.0
    %126 = vmatpush1.msra.mxu0 0.0
    %127 = vmatprep.subr.mxu0 0.0
    %128 = vmatpush1.msra.mxu0 0.0
    %129 = vmatprep.subr.mxu0 0.0
    %130 = vmatpush1.msra.mxu0 0.0
    %131 = vmatprep.subr.mxu0 0.0
    %132 = vmatpush1.msra.mxu0 0.0
    %133 = vmatprep.subr.mxu0 0.0
    %134 = vmatpush1.msra.mxu0 0.0
    %135 = vmatprep.subr.mxu0 0.0
    %136 = vmatpush1.msra.mxu0 0.0
    %137 = vmatprep.subr.mxu0 0.0
    %138 = vmatpush1.msra.mxu0 0.0
    %139 = vmatprep.subr.mxu0 0.0
    %140 = vmatpush1.msra.mxu0 0.0
    %141 = vmatprep.subr.mxu0 0.0
    %142 = vmatpush1.msra.mxu0 0.0
    %143 = vmatprep.subr.mxu0 0.0
    %144 = vmatpush1.msra.mxu0 0.0
    %145 = vmatprep.subr.mxu0 0.0
    %146 = vmatpush1.msra.mxu0 0.0
    %147 = vmatprep.mubr.f32.mxu0 0.0
    %148 = vmatmul.mubr.f32.gmra.mrb[0].mxu0 %v78
    %v149 = vpop.f32.mrb[0].mxu0
    %v150 = vadd.f32 %v74, %v149
    %v151 = vpop.f32.mrb[0].mxu0
    %152 = vmatprep.mubr.f32.mxu0 0.0
    %153 = vmatmul.mubr.f32.gmra.mrb[0].mxu0 %v81
    %v154 = vpop.f32.mrb[0].mxu0
    %v155 = vadd.f32 %v74, %v154
    %v156 = vpop.f32.mrb[0].mxu0
    %157 = vdwg.mxu0
    %158 = vst [vmem:[#allocation8] sm:$0xff] %v150
    %159 = vst [vmem:[#allocation8 + $0x8] sm:$0xff] %v155
    %v160 = vld [vmem:[#allocation7] sm:$0xff]
    %v161 = vld [vmem:[#allocation7 + $0x8] sm:$0xff]
    %v162 = vld [vmem:[%s4] sm:$0x1]
    %v164 = vlaneseq
    %v165 = vshrl.u32 %v164, 7
    %v166 = vsub.s32 0, %v165
    %v167 = vrot.slane %v162, %v166
    %169 = vmatprep.subr.mxu0 0.0
    %170 = vmatpush1.msra.mxu0 %v160
    %171 = vmatprep.subr.mxu0 0.0
    %172 = vmatpush1.msra.mxu0 %v161
    %173 = vmatprep.subr.mxu0 0.0
    %174 = vmatpush1.msra.mxu0 0.0
    %175 = vmatprep.subr.mxu0 0.0
    %176 = vmatpush1.msra.mxu0 0.0
    %177 = vmatprep.subr.mxu0 0.0
    %178 = vmatpush1.msra.mxu0 0.0
    %179 = vmatprep.subr.mxu0 0.0
    %180 = vmatpush1.msra.mxu0 0.0
    %181 = vmatprep.subr.mxu0 0.0
    %182 = vmatpush1.msra.mxu0 0.0
    %183 = vmatprep.subr.mxu0 0.0
    %184 = vmatpush1.msra.mxu0 0.0
    %185 = vmatprep.subr.mxu0 0.0
    %186 = vmatpush1.msra.mxu0 0.0
    %187 = vmatprep.subr.mxu0 0.0
    %188 = vmatpush1.msra.mxu0 0.0
    %189 = vmatprep.subr.mxu0 0.0
    %190 = vmatpush1.msra.mxu0 0.0
    %191 = vmatprep.subr.mxu0 0.0
    %192 = vmatpush1.msra.mxu0 0.0
    %193 = vmatprep.subr.mxu0 0.0
    %194 = vmatpush1.msra.mxu0 0.0
    %195 = vmatprep.subr.mxu0 0.0
    %196 = vmatpush1.msra.mxu0 0.0
    %197 = vmatprep.subr.mxu0 0.0
    %198 = vmatpush1.msra.mxu0 0.0
    %199 = vmatprep.subr.mxu0 0.0
    %200 = vmatpush1.msra.mxu0 0.0
    %201 = vmatprep.subr.mxu0 0.0
    %202 = vmatpush1.msra.mxu0 0.0
    %203 = vmatprep.subr.mxu0 0.0
    %204 = vmatpush1.msra.mxu0 0.0
    %205 = vmatprep.subr.mxu0 0.0
    %206 = vmatpush1.msra.mxu0 0.0
    %207 = vmatprep.subr.mxu0 0.0
    %208 = vmatpush1.msra.mxu0 0.0
    %209 = vmatprep.subr.mxu0 0.0
    %210 = vmatpush1.msra.mxu0 0.0
    %211 = vmatprep.subr.mxu0 0.0
    %212 = vmatpush1.msra.mxu0 0.0
    %213 = vmatprep.subr.mxu0 0.0
    %214 = vmatpush1.msra.mxu0 0.0
    %215 = vmatprep.subr.mxu0 0.0
    %216 = vmatpush1.msra.mxu0 0.0
    %217 = vmatprep.subr.mxu0 0.0
    %218 = vmatpush1.msra.mxu0 0.0
    %219 = vmatprep.subr.mxu0 0.0
    %220 = vmatpush1.msra.mxu0 0.0
    %221 = vmatprep.subr.mxu0 0.0
    %222 = vmatpush1.msra.mxu0 0.0
    %223 = vmatprep.subr.mxu0 0.0
    %224 = vmatpush1.msra.mxu0 0.0
    %225 = vmatprep.subr.mxu0 0.0
    %226 = vmatpush1.msra.mxu0 0.0
    %227 = vmatprep.subr.mxu0 0.0
    %228 = vmatpush1.msra.mxu0 0.0
    %229 = vmatprep.subr.mxu0 0.0
    %230 = vmatpush1.msra.mxu0 0.0
    %231 = vmatprep.subr.mxu0 0.0
    %232 = vmatpush1.msra.mxu0 0.0
    %233 = vmatprep.mubr.f32.mxu0 0.0
    %234 = vmatmul.mubr.f32.gmra.mrb[0].mxu0 %v78
    %v235 = vpop.f32.mrb[0].mxu0
    %v236 = vadd.f32 %v167, %v235
    %v237 = vpop.f32.mrb[0].mxu0
    %238 = vmatprep.mubr.f32.mxu0 0.0
    %239 = vmatmul.mubr.f32.gmra.mrb[0].mxu0 %v81
    %v240 = vpop.f32.mrb[0].mxu0
    %v241 = vadd.f32 %v167, %v240
    %v242 = vpop.f32.mrb[0].mxu0
    %243 = vdwg.mxu0
    %244 = vst [vmem:[#allocation9] sm:$0xff] %v236
    %245 = vst [vmem:[#allocation9 + $0x8] sm:$0xff] %v241
    // Predicated region
    $region34: #{tpu_custom_call.1} parent=1 // pred_check
      _
    $region35: #{tpu_custom_call.1} parent=1 // pred_check_branch
      %247 = sbr.rel (0) target = $region37
    $region36: #{tpu_custom_call.1} parent=1 // pred_region
      %s249 = ssub.s32 256, 256
      %250 = vsyncadd [#allocation4], %s249
      %s251 = sshll.u32 [#allocation8], 4
      %s252 = int_to_ptr.vmem [resolvable:$true] %s251
      %257 = dma.vmem_to_hbm [thread:$0]  %s252, 256, %s5, [#allocation4], 128, 128, 8
    $region37: #{tpu_custom_call.1} parent=1 // pred_fallthru
      _
    // Predicated region
    $region38: #{tpu_custom_call.1} parent=1 // pred_check
      _
    $region39: #{tpu_custom_call.1} parent=1 // pred_check_branch
      %259 = sbr.rel (0) target = $region41
    $region40: #{tpu_custom_call.1} parent=1 // pred_region
      %s261 = ssub.s32 256, 256
      %262 = vsyncadd [#allocation10], %s261
      %s263 = sshll.u32 [#allocation9], 4
      %s264 = int_to_ptr.vmem [resolvable:$true] %s263
      %269 = dma.vmem_to_hbm [thread:$0]  %s264, 256, %s6, [#allocation10], 128, 128, 8
    $region41: #{tpu_custom_call.1} parent=1 // pred_fallthru
      _
    // Predicated region
    $region42: #{tpu_custom_call.1} parent=1 // pred_check
      _
    $region43: #{tpu_custom_call.1} parent=1 // pred_check_branch
      %271 = sbr.rel (0) target = $region45
    $region44: #{tpu_custom_call.1} parent=1 // pred_region
      %272 = dma.done [#allocation4], 256
    $region45: #{tpu_custom_call.1} parent=1 // pred_fallthru
      _
    // Predicated region
    $region46: #{tpu_custom_call.1} parent=1 // pred_check
      _
    $region47: #{tpu_custom_call.1} parent=1 // pred_check_branch
      %274 = sbr.rel (0) target = $region49
    $region48: #{tpu_custom_call.1} parent=1 // pred_region
      %275 = dma.done [#allocation10], 256
    $region49: #{tpu_custom_call.1} parent=1 // pred_fallthru
      _
    %276 = vsyncpa [#allocation3], 1
    %277 = vsyncpa [#allocation6], 1
    %278 = vsyncpa [#allocation4], 1
    %279 = vsyncpa [#allocation10], 1

</llo_original>
